<compile_context>
chip_gen: v7x
topology: tpu7x:2x2x1
jax: 0.10.0
libtpu: 0.0.40
codegen_flags: <defaults>
</compile_context>

<pallas_src>
import functools

import jax
import jax.numpy as jnp
from jax.experimental import pallas as pl
from jax.experimental.pallas import tpu as pltpu


def _vmem_capacity_bytes(default=128 * 1024 * 1024):
    """Physical VMEM of the local TPU generation (v5e/v6e 128 MiB, v7x 64 MiB)."""
    try:
        cap = getattr(pltpu.get_tpu_info(), "vmem_capacity_bytes", None)
        if cap:
            return int(cap)
    except Exception:
        pass
    return default


def _channel_attention_kernel(x_ref, w1t_ref, w2t_ref, o_ref,
                              sum_acc, max_acc, *, hw_true, last_valid):
    # Grid: (batch-chunk [parallel], spatial-chunk [arbitrary reduction]).
    # x_ref:   (1, Nb, C, hw_tile)  lane-dense flattened-spatial block
    # w1t_ref: (C, Cmid)            fc1 weight, transposed
    # w2t_ref: (Cmid, C)            fc2 weight, transposed
    # o_ref:   (1, Nb, C)           sigmoid gate (written on last spatial step)
    # sum_acc / max_acc: (Nb, C) f32 running-sum / running-max scratch
    k = pl.program_id(1)
    n_k = pl.num_programs(1)
    hw_tile = x_ref.shape[-1]

    @pl.when(k == 0)
    def _init():
        sum_acc[...] = jnp.zeros_like(sum_acc)
        max_acc[...] = jnp.full_like(max_acc, -jnp.inf)

    if last_valid == hw_tile:
        # No spatial padding anywhere: accumulate straight off the block ref.
        # Sum in f32, max in the native dtype -- no full-size f32 temp.
        sum_acc[...] += jnp.sum(x_ref[0], axis=-1, dtype=jnp.float32)
        max_acc[...] = jnp.maximum(
            max_acc[...], jnp.max(x_ref[0], axis=-1).astype(jnp.float32))
    else:
        @pl.when(k < n_k - 1)
        def _full_tile():
            sum_acc[...] += jnp.sum(x_ref[0], axis=-1, dtype=jnp.float32)
            max_acc[...] = jnp.maximum(
                max_acc[...], jnp.max(x_ref[0], axis=-1).astype(jnp.float32))

        @pl.when(k == n_k - 1)
        def _tail_tile():
            xb = x_ref[0]                                    # (Nb, C, hw_tile)
            lane = jax.lax.broadcasted_iota(jnp.int32, xb.shape, xb.ndim - 1)
            valid = lane < last_valid
            sum_acc[...] += jnp.sum(jnp.where(valid, xb, jnp.zeros_like(xb)),
                                    axis=-1, dtype=jnp.float32)
            max_acc[...] = jnp.maximum(
                max_acc[...],
                jnp.max(jnp.where(valid, xb, jnp.full_like(xb, -jnp.inf)),
                        axis=-1).astype(jnp.float32))

    @pl.when(k == n_k - 1)
    def _finalize():
        nb = sum_acc.shape[0]
        avg = sum_acc[...] * jnp.float32(1.0 / hw_true)      # (Nb, C) f32
        mx = max_acc[...]                                    # (Nb, C) f32
        # Fused shared MLP: one fc1 dot + relu + one fc2 dot for both branches.
        p = jnp.concatenate([avg, mx], axis=0)               # (2*Nb, C)
        wdt = w1t_ref.dtype
        h = jnp.maximum(
            jnp.dot(p.astype(wdt), w1t_ref[...],
                    preferred_element_type=jnp.float32), 0.0)
        y = jnp.dot(h.astype(wdt), w2t_ref[...],
                    preferred_element_type=jnp.float32)       # (2*Nb, C)
        gate = jax.nn.sigmoid(y[:nb] + y[nb:])
        o_ref[0] = gate.astype(o_ref.dtype)


def channel_attention(x, w1, w2, *, block_batch=None, block_budget_bytes=None):
    """x: (N, C, H, W); w1: (C//ratio, C) fc1 weight; w2: (C, C//ratio) fc2 weight.

    Returns the sigmoid channel gate of shape (N, C, 1, 1) (same as the
    PyTorch module's forward output), in x.dtype.
    """
    N, C, H, W = x.shape
    HW = H * W
    Cmid = w1.shape[0]
    itemsize = x.dtype.itemsize

    # Generation-aware budgets (Pallas double-buffers the x block -> x2).
    vmem_cap = _vmem_capacity_bytes()
    budget = (block_budget_bytes if block_budget_bytes is not None
              else max(1 << 20, vmem_cap // 8))
    vmem_limit = int(vmem_cap * 5 // 8)

    bytes_per_image = C * HW * itemsize

    if block_batch is not None:
        nb = int(block_batch)
        assert N % nb == 0
        hw_tile, grid_hw, hw_pad = HW, 1, 0
    elif bytes_per_image <= budget:
        # Whole images per block: largest divisor of N within budget, but keep
        # >= 2 parallel grid steps so v7x's two TensorCores both run.
        nb = max(1, min(N, budget // bytes_per_image))
        if N >= 2:
            nb = min(nb, N // 2)
        while N % nb != 0:
            nb -= 1
        hw_tile, grid_hw, hw_pad = HW, 1, 0
    else:
        # A single image exceeds the budget: tile the flattened spatial axis
        # and reduce across it via scratch accumulators (axis "arbitrary").
        nb = 1
        hw_tile = max(128, (budget // (C * itemsize)) // 128 * 128)
        hw_tile = min(hw_tile, pl.cdiv(HW, 128) * 128)
        grid_hw = pl.cdiv(HW, hw_tile)
        hw_pad = grid_hw * hw_tile - HW

    grid_n = N // nb
    last_valid = hw_tile - hw_pad            # valid lanes in the final hw tile

    # Lane-dense layout: flattened spatial on the minor axis; trailing block
    # dims are either full-extent or 128-multiples, so no (8,128) issues.
    x3 = x.reshape(N, C, HW)
    if hw_pad:
        x3 = jnp.pad(x3, ((0, 0), (0, 0), (0, hw_pad)))
    x4 = x3.reshape(grid_n, nb, C, grid_hw * hw_tile)
    w1_t = jnp.transpose(w1)                 # (C, Cmid)
    w2_t = jnp.transpose(w2)                 # (Cmid, C)

    kernel = functools.partial(_channel_attention_kernel,
                               hw_true=HW, last_valid=last_valid)

    gate = pl.pallas_call(
        kernel,
        out_shape=jax.ShapeDtypeStruct((grid_n, nb, C), x.dtype),
        grid_spec=pltpu.PrefetchScalarGridSpec(
            num_scalar_prefetch=0,
            grid=(grid_n, grid_hw),
            in_specs=[
                pl.BlockSpec((1, nb, C, hw_tile), lambda n, k: (n, 0, 0, k)),
                pl.BlockSpec((C, Cmid), lambda n, k: (0, 0)),
                pl.BlockSpec((Cmid, C), lambda n, k: (0, 0)),
            ],
            out_specs=pl.BlockSpec((1, nb, C), lambda n, k: (n, 0, 0)),
            scratch_shapes=[
                pltpu.VMEM((nb, C), jnp.float32),   # running sum
                pltpu.VMEM((nb, C), jnp.float32),   # running max
            ],
        ),
        compiler_params=pltpu.CompilerParams(
            dimension_semantics=("parallel", "arbitrary"),
            vmem_limit_bytes=vmem_limit,
        ),
    )(x4, w1_t, w2_t)

    return gate.reshape(N, C, 1, 1)


def channel_attention_ref(x, w1, w2):
    """Pure-JAX reference of the PyTorch ChannelAttention.forward."""
    N, C, H, W = x.shape
    avg = x.mean(axis=(2, 3))                                # (N, C)
    mx = x.max(axis=(2, 3))                                  # (N, C)

    def shared_mlp(p):
        h = jax.nn.relu(jnp.einsum('mc,nc->nm', w1, p))      # (N, Cmid)
        return jnp.einsum('cm,nm->nc', w2, h)                # (N, C)

    out = jax.nn.sigmoid(shared_mlp(avg) + shared_mlp(mx))
    return out.reshape(N, C, 1, 1)


if __name__ == "__main__":
    # Shapes consistent with the module: in_planes=16, ratio=4, h=w=16, batch=2.
    N, C, H, W = 2, 16, 16, 16
    ratio = 4
    Cmid = C // ratio

    key = jax.random.PRNGKey(0)
    kx, k1, k2, k3 = jax.random.split(key, 4)
    x = jax.random.normal(kx, (N, C, H, W), dtype=jnp.float32)
    # Conv2d(kernel_size=1, bias=False) weights == plain channel matrices.
    w1 = jax.random.normal(k1, (Cmid, C), dtype=jnp.float32) * 0.1   # fc1
    w2 = jax.random.normal(k2, (C, Cmid), dtype=jnp.float32) * 0.1   # fc2

    out = jax.block_until_ready(channel_attention(x, w1, w2))
    ref = channel_attention_ref(x, w1, w2)
    assert out.shape == (N, C, 1, 1)
    assert jnp.allclose(out, ref, atol=1e-5, rtol=1e-5), "mismatch vs reference"

    # Also exercise the spatial-reduction fallback (large-image path) with a
    # tiny forced budget: HW=300 -> three 128-wide tiles, masked 44-valid tail.
    x2 = jax.random.normal(k3, (1, C, 15, 20), dtype=jnp.float32)
    out2 = jax.block_until_ready(
        channel_attention(x2, w1, w2, block_budget_bytes=8192))
    ref2 = channel_attention_ref(x2, w1, w2)
    assert jnp.allclose(out2, ref2, atol=1e-5, rtol=1e-5), "mismatch (tiled path)"

    print("KERNEL_OK")
</pallas_src>

<mosaic_0001>
module attributes {stable_mosaic.version = 11 : i64} {
  func.func @_channel_attention_kernel(%arg0: i32, %arg1: i32, %arg2: memref<1x1x16x256xf32, #tpu.memory_space<vmem>>, %arg3: memref<16x4xf32, #tpu.memory_space<vmem>>, %arg4: memref<4x16xf32, #tpu.memory_space<vmem>>, %arg5: memref<1x1x16xf32, #tpu.memory_space<vmem>>, %arg6: memref<1x16xf32, #tpu.memory_space<vmem>>, %arg7: memref<1x16xf32, #tpu.memory_space<vmem>>) attributes {dimension_semantics = [#tpu.dimension_semantics<parallel>, #tpu.dimension_semantics<arbitrary>], iteration_bounds = array<i64: 2, 1>, scalar_prefetch = 0 : i64, scratch_operands = 2 : i64, tpu.core_type = #tpu.core_type<tc>, window_params = [{transform_indices = @transform_0, window_bounds = array<i64: 1, 1, 16, 256>}, {pipeline_mode = #tpu.pipeline_mode<synchronous>, transform_indices = @transform_1, window_bounds = array<i64: 16, 4>}, {pipeline_mode = #tpu.pipeline_mode<synchronous>, transform_indices = @transform_2, window_bounds = array<i64: 4, 16>}, {transform_indices = @transform_3, window_bounds = array<i64: 1, 1, 16>}]} {
    %c0_i32 = arith.constant 0 : i32
    %0 = arith.cmpi eq, %arg1, %c0_i32 : i32
    %1 = arith.extui %0 : i1 to i32
    %c0_i32_0 = arith.constant 0 : i32
    %2 = arith.cmpi ne, %1, %c0_i32_0 : i32
    scf.if %2 {
      %cst_19 = arith.constant 0.000000e+00 : f32
      %18 = vector.broadcast %cst_19 : f32 to vector<1x16xf32>
      %c0_20 = arith.constant 0 : index
      %c0_21 = arith.constant 0 : index
      %19 = vector.load %arg6[%c0_20, %c0_21] : memref<1x16xf32, #tpu.memory_space<vmem>>, vector<1x16xf32>
      tpu.vector_store %arg6[%c0_20, %c0_21], %18 {strides = array<i32>} : memref<1x16xf32, #tpu.memory_space<vmem>>, vector<1x16xf32>,
      %cst_22 = arith.constant 0xFF800000 : f32
      %20 = vector.broadcast %cst_22 : f32 to vector<1x16xf32>
      %c0_23 = arith.constant 0 : index
      %c0_24 = arith.constant 0 : index
      %21 = vector.load %arg7[%c0_23, %c0_24] : memref<1x16xf32, #tpu.memory_space<vmem>>, vector<1x16xf32>
      tpu.vector_store %arg7[%c0_23, %c0_24], %20 {strides = array<i32>} : memref<1x16xf32, #tpu.memory_space<vmem>>, vector<1x16xf32>,
    } else {
    }
    %c0 = arith.constant 0 : index
    %c0_1 = arith.constant 0 : index
    %3 = vector.load %arg6[%c0, %c0_1] : memref<1x16xf32, #tpu.memory_space<vmem>>, vector<1x16xf32>
    %c0_2 = arith.constant 0 : index
    %c0_3 = arith.constant 0 : index
    %c0_4 = arith.constant 0 : index
    %c0_5 = arith.constant 0 : index
    %4 = vector.load %arg2[%c0_2, %c0_3, %c0_4, %c0_5] : memref<1x1x16x256xf32, #tpu.memory_space<vmem>>, vector<1x1x16x256xf32>
    %5 = vector.shape_cast %4 : vector<1x1x16x256xf32> to vector<1x16x256xf32>
    %cst = arith.constant dense<0.000000e+00> : vector<1x16xf32>
    %6 = vector.multi_reduction <add>, %5, %cst [2] : vector<1x16x256xf32> to vector<1x16xf32>
    %7 = arith.addf %3, %6 : vector<1x16xf32>
    %c0_6 = arith.constant 0 : index
    %c0_7 = arith.constant 0 : index
    %8 = vector.load %arg6[%c0_6, %c0_7] : memref<1x16xf32, #tpu.memory_space<vmem>>, vector<1x16xf32>
    tpu.vector_store %arg6[%c0_6, %c0_7], %7 {strides = array<i32>} : memref<1x16xf32, #tpu.memory_space<vmem>>, vector<1x16xf32>,
    %c0_8 = arith.constant 0 : index
    %c0_9 = arith.constant 0 : index
    %9 = vector.load %arg7[%c0_8, %c0_9] : memref<1x16xf32, #tpu.memory_space<vmem>>, vector<1x16xf32>
    %c0_10 = arith.constant 0 : index
    %c0_11 = arith.constant 0 : index
    %c0_12 = arith.constant 0 : index
    %c0_13 = arith.constant 0 : index
    %10 = vector.load %arg2[%c0_10, %c0_11, %c0_12, %c0_13] : memref<1x1x16x256xf32, #tpu.memory_space<vmem>>, vector<1x1x16x256xf32>
    %11 = vector.shape_cast %10 : vector<1x1x16x256xf32> to vector<1x16x256xf32>
    %cst_14 = arith.constant dense<0xFF800000> : vector<1x16xf32>
    %12 = vector.multi_reduction <maximumf>, %11, %cst_14 [2] : vector<1x16x256xf32> to vector<1x16xf32>
    %13 = arith.maximumf %9, %12 : vector<1x16xf32>
    %c0_15 = arith.constant 0 : index
    %c0_16 = arith.constant 0 : index
    %14 = vector.load %arg7[%c0_15, %c0_16] : memref<1x16xf32, #tpu.memory_space<vmem>>, vector<1x16xf32>
    tpu.vector_store %arg7[%c0_15, %c0_16], %13 {strides = array<i32>} : memref<1x16xf32, #tpu.memory_space<vmem>>, vector<1x16xf32>,
    %c0_i32_17 = arith.constant 0 : i32
    %15 = arith.cmpi eq, %arg1, %c0_i32_17 : i32
    %16 = arith.extui %15 : i1 to i32
    %c0_i32_18 = arith.constant 0 : i32
    %17 = arith.cmpi ne, %16, %c0_i32_18 : i32
    scf.if %17 {
      %c0_19 = arith.constant 0 : index
      %c0_20 = arith.constant 0 : index
      %18 = vector.load %arg6[%c0_19, %c0_20] : memref<1x16xf32, #tpu.memory_space<vmem>>, vector<1x16xf32>
      %cst_21 = arith.constant 3.906250e-03 : f32
      %19 = vector.broadcast %cst_21 : f32 to vector<1x16xf32>
      %20 = arith.mulf %18, %19 : vector<1x16xf32>
      %c0_22 = arith.constant 0 : index
      %c0_23 = arith.constant 0 : index
      %21 = vector.load %arg7[%c0_22, %c0_23] : memref<1x16xf32, #tpu.memory_space<vmem>>, vector<1x16xf32>
      %22 = tpu.concatenate %20, %21 in 0 : vector<1x16xf32>, vector<1x16xf32> -> vector<2x16xf32>
      %c0_24 = arith.constant 0 : index
      %c0_25 = arith.constant 0 : index
      %23 = vector.load %arg3[%c0_24, %c0_25] : memref<16x4xf32, #tpu.memory_space<vmem>>, vector<16x4xf32>
      %cst_26 = arith.constant dense<0.000000e+00> : vector<2x4xf32>
      %24 = tpu.matmul %22, %23, %cst_26 {dimension_numbers = #tpu.dot_dimension_numbers<[1], [0], [0], [1], [0, 0, 1, 1], [], []>} : vector<2x16xf32>, vector<16x4xf32>, vector<2x4xf32> -> vector<2x4xf32>
      %cst_27 = arith.constant 0.000000e+00 : f32
      %25 = vector.broadcast %cst_27 : f32 to vector<2x4xf32>
      %26 = arith.maximumf %24, %25 : vector<2x4xf32>
      %c0_28 = arith.constant 0 : index
      %c0_29 = arith.constant 0 : index
      %27 = vector.load %arg4[%c0_28, %c0_29] : memref<4x16xf32, #tpu.memory_space<vmem>>, vector<4x16xf32>
      %cst_30 = arith.constant dense<0.000000e+00> : vector<2x16xf32>
      %28 = tpu.matmul %26, %27, %cst_30 {dimension_numbers = #tpu.dot_dimension_numbers<[1], [0], [0], [1], [0, 0, 1, 1], [], []>} : vector<2x4xf32>, vector<4x16xf32>, vector<2x16xf32> -> vector<2x16xf32>
      %29 = vector.extract_strided_slice %28 {offsets = [0, 0], sizes = [1, 16], strides = [1, 1]} : vector<2x16xf32> to vector<1x16xf32>
      %30 = vector.extract_strided_slice %28 {offsets = [1, 0], sizes = [1, 16], strides = [1, 1]} : vector<2x16xf32> to vector<1x16xf32>
      %31 = arith.addf %29, %30 : vector<1x16xf32>
      %32 = arith.negf %31 : vector<1x16xf32>
      %33 = math.exp %32 : vector<1x16xf32>
      %cst_31 = arith.constant 1.000000e+00 : f32
      %34 = vector.broadcast %cst_31 : f32 to vector<1x16xf32>
      %35 = arith.addf %34, %33 : vector<1x16xf32>
      %36 = arith.divf %34, %35 : vector<1x16xf32>
      %c0_32 = arith.constant 0 : index
      %c0_33 = arith.constant 0 : index
      %c0_34 = arith.constant 0 : index
      %37 = vector.load %arg5[%c0_32, %c0_33, %c0_34] : memref<1x1x16xf32, #tpu.memory_space<vmem>>, vector<1x1x16xf32>
      %38 = vector.shape_cast %37 : vector<1x1x16xf32> to vector<1x16xf32>
      %39 = vector.shape_cast %36 : vector<1x16xf32> to vector<1x1x16xf32>
      tpu.vector_store %arg5[%c0_32, %c0_33, %c0_34], %39 {strides = array<i32>} : memref<1x1x16xf32, #tpu.memory_space<vmem>>, vector<1x1x16xf32>,
    } else {
    }
    return
  }
  func.func @transform_0(%arg0: i32, %arg1: i32) -> (i32, i32, i32, i32) {
    %c0_i32 = arith.constant 0 : i32
    %c0_i32_0 = arith.constant 0 : i32
    %c0_i32_1 = arith.constant 0 : i32
    return %arg0, %c0_i32, %c0_i32_0, %arg1 : i32, i32, i32, i32
  }
  func.func @transform_1(%arg0: i32, %arg1: i32) -> (i32, i32) {
    %c0_i32 = arith.constant 0 : i32
    %c0_i32_0 = arith.constant 0 : i32
    %c0_i32_1 = arith.constant 0 : i32
    return %c0_i32, %c0_i32_0 : i32, i32
  }
  func.func @transform_2(%arg0: i32, %arg1: i32) -> (i32, i32) {
    %c0_i32 = arith.constant 0 : i32
    %c0_i32_0 = arith.constant 0 : i32
    %c0_i32_1 = arith.constant 0 : i32
    return %c0_i32, %c0_i32_0 : i32, i32
  }
  func.func @transform_3(%arg0: i32, %arg1: i32) -> (i32, i32, i32) {
    %c0_i32 = arith.constant 0 : i32
    %c0_i32_0 = arith.constant 0 : i32
    %c0_i32_1 = arith.constant 0 : i32
    return %arg0, %c0_i32, %c0_i32_0 : i32, i32, i32
  }
}

</mosaic_0001>

<llo_original>
// kernel: tpu_custom_call.1
$region0: #{tpu_custom_call.1}
  #allocation0 [shape = 'u32[]', space=smem, size = 0x4, offset = 0x4, fixed_abs, tag = 'smem constant byte address 0x4 - core index']
  #allocation1 [shape = 'u32[144,128]{1,0:T(1,128)}', space=vmem, size = 0x12000, scoped, tag = 'internal scratch']
  #allocation2 [shape = 'f32[1,16]{1,0:T(1,128)}', space=vmem, size = 0x200, scoped, tag = 'scratch operand']
  #allocation3 [shape = 'f32[1,16]{1,0:T(1,128)}', space=vmem, size = 0x200, scoped, tag = 'scratch operand']
  %s0 = inlined_call_operand.hbm [shape: f32[2,1,16,256], index: 0, kind: input, shape index: {}]
  %s1 = inlined_call_operand.hbm [shape: f32[16,4], index: 1, kind: input, shape index: {}]
  %s2 = inlined_call_operand.hbm [shape: f32[4,16], index: 2, kind: input, shape index: {}]
  %s3 = inlined_call_operand.hbm [shape: f32[2,1,16], index: 3, kind: output, shape index: {}]
  %s4 = sld [smem:[#allocation0]]
  $region65: #{tpu_custom_call.1} parent=0
    _
  %s6 = ssub.s32 1, %s4
  %s7 = scalar_select 0, %s6, %s4
  $region1: #{tpu_custom_call.1} parent=0
    #allocation4 [shape = 'u8[32768]{0}', space=vmem, size = 0x8000, scoped, tag = 'input window, operand 0']
    #allocation5 [shape = 's32[2]{0}', space=sflag, size = 0x8, scoped, tag = 'scoped memory for tpu_custom_call.1']
    #allocation6 [shape = 's32[2]{0}', space=sflag, size = 0x8, scoped, tag = 'scoped memory for tpu_custom_call.1']
    #allocation7 [shape = 'u8[8192]{0}', space=vmem, size = 0x2000, scoped, tag = 'input window, operand 1, single buffered']
    #allocation8 [shape = 's32[1]{0}', space=sflag, size = 0x4, scoped, tag = 'scoped memory for tpu_custom_call.1']
    #allocation9 [shape = 'u8[2048]{0}', space=vmem, size = 0x800, scoped, tag = 'input window, operand 2, single buffered']
    #allocation10 [shape = 'u8[1024]{0}', space=vmem, size = 0x400, scoped, tag = 'output window, operand 0']
    %8 = vsyncpa [#allocation5], 0
    %s9 = scalar_lea.sflag [#allocation5], 1
    %10 = vsyncpa %s9, 0
    %11 = vsyncpa [#allocation8], 0
    %12 = vsyncpa [#allocation6], 0
    %s13 = scalar_lea.sflag [#allocation6], 1
    %14 = vsyncpa %s13, 0
    loop: start=0, step=1, limit=4
    $region2: #{tpu_custom_call.1} parent=1 // loop_pre_header
      _
    $region3: #{tpu_custom_call.1} parent=1 // loop_header
      %s16 = sphi 0, %s20
      %p17 = scmp.ge.s32.totalorder %s16, 4
      %s23 = sphi 0, %s35
      %s24 = sphi 0, %s31
      %s25 = sphi 0, %s23
      %s26 = sphi 0, %s24
      %s27 = sphi 0, %s25
      %s28 = sphi 0, %s26
      %s40 = sphi 0, %s42
      %s43 = sphi 0, %s40
      %s44 = sphi 0, %s43
      %s60 = sphi 0, %s44
      %s64 = sphi 0, %s64
      %s66 = sphi 0, %s64
      %s67 = sphi 0, %s66
      %s81 = sphi 0, %s67
      %s85 = sphi 0, %s85
      %s87 = sphi 0, %s85
      %s88 = sphi 0, %s87
      %s102 = sphi 0, %s88
      %s108 = sphi 0, %s110
      %s111 = sphi 0, %s108
      %s112 = sphi 0, %s111
      %s128 = sphi 0, %s112
    $region4: #{tpu_custom_call.1} parent=1 // loop_header_branch
      %19 = sbr.rel (%p17) target = $region8
    $region5: #{tpu_custom_call.1} parent=1 // loop_body
      %s21 = ssub.s32 %s16, 1
      %s22 = ssub.s32 %s16, 2
      %s29 = sadd.s32 1, %s24
      %p30 = scmp.ge.s32.totalorder %s29, 1
      %s31 = scalar_select %p30, 0, %s29
      %s32 = sadd.s32 1, %s23
      %s33 = scalar_select %p30, %s32, %s23
      %p34 = scmp.ge.s32.totalorder %s33, 2
      %s35 = scalar_select %p34, 0, %s33
      %s36 = ssub.s32 %s23, %s35
      %s37 = ssub.s32 %s24, %s31
      %s38 = sor.u32 %s36, %s37
      %p39 = scmp.eq.s32.totalorder %s38, 0
      %s41 = sadd.s32 %s40, 1
      %s42 = scalar_select %p39, %s40, %s41
      %p45 = pneg %p39
      %p46 = scmp.eq.s32.totalorder %s16, 1
      %p47 = por %p45, %p46
      %p48 = scmp.ne.s32.totalorder %s40, %s43
      %p49 = scmp.eq.s32.totalorder %s16, 0
      %p50 = por %p48, %p49
      %p51 = scmp.ne.s32.totalorder %s40, %s43
      %p52 = scmp.eq.s32.totalorder %s21, 1
      %p53 = por %p51, %p52
      %p54 = scmp.ne.s32.totalorder %s43, %s44
      %p55 = scmp.eq.s32.totalorder %s21, 0
      %p56 = por %p54, %p55
      %p57 = scmp.ne.s32.totalorder %s43, %s44
      %p58 = scmp.eq.s32.totalorder %s22, 1
      %p59 = por %p57, %p58
      %p61 = scmp.ne.s32.totalorder %s44, %s60
      %p62 = scmp.eq.s32.totalorder %s22, 0
      %p63 = por %p61, %p62
      %s65 = sadd.s32 %s64, 1
      %p68 = scmp.eq.s32.totalorder %s16, 1
      %p69 = scmp.ne.s32.totalorder %s64, %s66
      %p70 = scmp.eq.s32.totalorder %s16, 0
      %p71 = por %p69, %p70
      %p72 = scmp.ne.s32.totalorder %s64, %s66
      %p73 = scmp.eq.s32.totalorder %s21, 1
      %p74 = por %p72, %p73
      %p75 = scmp.ne.s32.totalorder %s66, %s67
      %p76 = scmp.eq.s32.totalorder %s21, 0
      %p77 = por %p75, %p76
      %p78 = scmp.ne.s32.totalorder %s66, %s67
      %p79 = scmp.eq.s32.totalorder %s22, 1
      %p80 = por %p78, %p79
      %p82 = scmp.ne.s32.totalorder %s67, %s81
      %p83 = scmp.eq.s32.totalorder %s22, 0
      %p84 = por %p82, %p83
      %s86 = sadd.s32 %s85, 1
      %p89 = scmp.eq.s32.totalorder %s16, 1
      %p90 = scmp.ne.s32.totalorder %s85, %s87
      %p91 = scmp.eq.s32.totalorder %s16, 0
      %p92 = por %p90, %p91
      %p93 = scmp.ne.s32.totalorder %s85, %s87
      %p94 = scmp.eq.s32.totalorder %s21, 1
      %p95 = por %p93, %p94
      %p96 = scmp.ne.s32.totalorder %s87, %s88
      %p97 = scmp.eq.s32.totalorder %s21, 0
      %p98 = por %p96, %p97
      %p99 = scmp.ne.s32.totalorder %s87, %s88
      %p100 = scmp.eq.s32.totalorder %s22, 1
      %p101 = por %p99, %p100
      %p103 = scmp.ne.s32.totalorder %s88, %s102
      %p104 = scmp.eq.s32.totalorder %s22, 0
      %p105 = por %p103, %p104
      %s106 = ssub.s32 %s23, %s35
      %p107 = scmp.eq.s32.totalorder %s106, 0
      %s109 = sadd.s32 %s108, 1
      %s110 = scalar_select %p107, %s108, %s109
      %p113 = pneg %p107
      %p114 = scmp.eq.s32.totalorder %s16, 1
      %p115 = por %p113, %p114
      %p116 = scmp.ne.s32.totalorder %s108, %s111
      %p117 = scmp.eq.s32.totalorder %s16, 0
      %p118 = por %p116, %p117
      %p119 = scmp.ne.s32.totalorder %s108, %s111
      %p120 = scmp.eq.s32.totalorder %s21, 1
      %p121 = por %p119, %p120
      %p122 = scmp.ne.s32.totalorder %s111, %s112
      %p123 = scmp.eq.s32.totalorder %s21, 0
      %p124 = por %p122, %p123
      %p125 = scmp.ne.s32.totalorder %s111, %s112
      %p126 = scmp.eq.s32.totalorder %s22, 1
      %p127 = por %p125, %p126
      %p129 = scmp.ne.s32.totalorder %s112, %s128
      %p130 = scmp.eq.s32.totalorder %s22, 0
      %p131 = por %p129, %p130
      %p132 = scmp.le.s32.totalorder 1, %s16
      %p133 = scmp.lt.s32.totalorder %s16, 3
      %p134 = pnand %p132, %p133
      %p135 = pneg %p134
      // Predicated region
      $region9: #{tpu_custom_call.1} parent=5 // pred_check
        _
      $region10: #{tpu_custom_call.1} parent=5 // pred_check_branch
        %137 = sbr.rel (%p134) target = $region12
      $region11: #{tpu_custom_call.1} parent=5 // pred_region
        %s138 = ssub.s32 %s16, 1
        // Predicated region
        $region13: #{tpu_custom_call.1} parent=11 // pred_check
          %p139 = pneg %p77
        $region14: #{tpu_custom_call.1} parent=11 // pred_check_branch
          %141 = sbr.rel (%p139) target = $region16
        $region15: #{tpu_custom_call.1} parent=11 // pred_region
          %s143 = ssub.s32 256, 256
          %144 = vsyncadd [#allocation8], %s143
          %s145 = sshll.u32 [#allocation7], 4
          %s146 = int_to_ptr.vmem [resolvable:$true] %s145
          %151 = dma.hbm_to_vmem [thread:$0]  %s1, 256, %s146, [#allocation8], 128, 128, 8
        $region16: #{tpu_custom_call.1} parent=11 // pred_fallthru
          _
        // Predicated region
        $region17: #{tpu_custom_call.1} parent=11 // pred_check
          %p152 = pneg %p98
        $region18: #{tpu_custom_call.1} parent=11 // pred_check_branch
          %154 = sbr.rel (%p152) target = $region20
        $region19: #{tpu_custom_call.1} parent=11 // pred_region
          %s156 = ssub.s32 64, 64
          %157 = vsyncadd [#allocation8], %s156
          %s159 = sshll.u32 [#allocation9], 4
          %s160 = int_to_ptr.vmem [resolvable:$true] %s159
          %162 = dma.hbm_to_vmem [thread:$0]  %s2, 64, %s160, [#allocation8]
        $region20: #{tpu_custom_call.1} parent=11 // pred_fallthru
          _
      $region12: #{tpu_custom_call.1} parent=5 // pred_fallthru
        _
      %p163 = scmp.lt.s32.totalorder %s16, 2
      // Predicated region
      $region21: #{tpu_custom_call.1} parent=5 // pred_check
        %p164 = pneg %p163
      $region22: #{tpu_custom_call.1} parent=5 // pred_check_branch
        %166 = sbr.rel (%p164) target = $region24
      $region23: #{tpu_custom_call.1} parent=5 // pred_region
        // Predicated region
        $region25: #{tpu_custom_call.1} parent=23 // pred_check
          %p167 = pneg %p50
        $region26: #{tpu_custom_call.1} parent=23 // pred_check_branch
          %169 = sbr.rel (%p167) target = $region28
        $region27: #{tpu_custom_call.1} parent=23 // pred_region
          %s170 = sand.u32 %s40, 1
          %s171 = scalar_lea.sflag [#allocation5], %s170
          %s172 = sand.u32 %s40, 1
          %s173 = smul.addr %s172, 32
          %s174 = scalar_lea.vmem [#allocation4], %s173
          %s175 = smul.u32 2, %s24
          %s177 = ssub.s32 512, 512
          %178 = vsyncadd %s171, %s177
          %s179 = smul.addr %s23, 4
          %s180 = sadd.s32 %s175, %s179
          %s181 = smul.addr %s180, 128
          %s182 = scalar_lea.hbm %s0, %s181
          %s183 = sshll.u32 %s174, 4
          %s184 = int_to_ptr.vmem [resolvable:$true] %s183
          %189 = dma.hbm_to_vmem [thread:$0]  %s182, 512, %s184, %s171, 256, 256, 16
        $region28: #{tpu_custom_call.1} parent=23 // pred_fallthru
          _
      $region24: #{tpu_custom_call.1} parent=5 // pred_fallthru
        _
      %p190 = scmp.le.s32.totalorder 1, %s16
      %p191 = scmp.lt.s32.totalorder %s16, 3
      %p192 = pnand %p190, %p191
      %p193 = pneg %p192
      // Predicated region
      $region29: #{tpu_custom_call.1} parent=5 // pred_check
        _
      $region30: #{tpu_custom_call.1} parent=5 // pred_check_branch
        %195 = sbr.rel (%p192) target = $region32
      $region31: #{tpu_custom_call.1} parent=5 // pred_region
        %s196 = ssub.s32 %s16, 1
        %s197 = sand.u32 %s43, 1
        %s198 = scalar_lea.sflag [#allocation5], %s197
        %s199 = sand.u32 %s43, 1
        %s200 = smul.addr %s199, 32
        %s201 = scalar_lea.vmem [#allocation4], %s200
        // Predicated region
        $region33: #{tpu_custom_call.1} parent=31 // pred_check
          %p202 = pneg %p56
        $region34: #{tpu_custom_call.1} parent=31 // pred_check_branch
          %204 = sbr.rel (%p202) target = $region36
        $region35: #{tpu_custom_call.1} parent=31 // pred_region
          %205 = dma.done %s198, 512
        $region36: #{tpu_custom_call.1} parent=31 // pred_fallthru
          _
        // Predicated region
        $region37: #{tpu_custom_call.1} parent=31 // pred_check
          %p206 = pneg %p77
        $region38: #{tpu_custom_call.1} parent=31 // pred_check_branch
          %208 = sbr.rel (%p206) target = $region40
        $region39: #{tpu_custom_call.1} parent=31 // pred_region
          %209 = dma.done [#allocation8], 256
        $region40: #{tpu_custom_call.1} parent=31 // pred_fallthru
          _
        // Predicated region
        $region41: #{tpu_custom_call.1} parent=31 // pred_check
          %p210 = pneg %p98
        $region42: #{tpu_custom_call.1} parent=31 // pred_check_branch
          %212 = sbr.rel (%p210) target = $region44
        $region43: #{tpu_custom_call.1} parent=31 // pred_region
          %213 = dma.done [#allocation8], 64
        $region44: #{tpu_custom_call.1} parent=31 // pred_fallthru
          _
        %s214 = sand.u32 %s43, 1
        %s215 = scalar_lea.sflag [#allocation5], %s214
        %s216 = sand.u32 %s43, 1
        %s217 = smul.addr %s216, 32
        %s218 = scalar_lea.vmem [#allocation4], %s217
        %p219 = pneg %p56
        %p220 = pneg %p53
        %p221 = pneg %p77
        %p222 = pneg %p74
        %p223 = pneg %p98
        %p224 = pneg %p95
        %p225 = pneg %p124
        %p226 = pneg %p121
        %s227 = sand.u32 %s111, 1
        %s228 = scalar_lea.sflag [#allocation6], %s227
        %s229 = sand.u32 %s111, 1
        %s230 = scalar_lea.vmem [#allocation10], %s229
        %s231 = smul.u32 2, %s26
        %p232 = scmp.eq.s32.totalorder %s26, 0
        // Predicated region
        $region45: #{tpu_custom_call.1} parent=31 // pred_check
          %p233 = pneg %p232
        $region46: #{tpu_custom_call.1} parent=31 // pred_check_branch
          %235 = sbr.rel (%p233) target = $region48
        $region47: #{tpu_custom_call.1} parent=31 // pred_region
          %vm236 = vcmask 122880
          %237 = vst.msk [vmem:[#allocation2] sm:$0x1] %vm236, 0.0
          %238 = vst.msk [vmem:[#allocation3] sm:$0x1] %vm236, -inf
        $region48: #{tpu_custom_call.1} parent=31 // pred_fallthru
          _
        %v239 = vld [vmem:[#allocation2] sm:$0x1]
        %v240 = vld [vmem:[%s201] sm:$0xff]
        %v241 = vld [vmem:[%s201 + $0x8] sm:$0xff]
        %v242 = vld [vmem:[%s201 + $0x10] sm:$0xff]
        %v243 = vld [vmem:[%s201 + $0x18] sm:$0xff]
        %v244 = vadd.f32 %v240, %v241
        %245 = vadd.xlane.f32.xlu0 %v244
        %v246 = vpop.xlane.xlu0 %245
        %v247 = vadd.f32 %v242, %v243
        %248 = vadd.xlane.f32.xlu0 %v247
        %v249 = vpop.xlane.xlu0 %248
        %v252 = vlaneseq
        %v253 = vshrl.u32 %v252, 7
        %v254 = vsub.s32 0, %v253
        %v255 = vrot.slane %v246, %v254
        %v256 = vlaneseq
        %v257 = vshrl.u32 %v256, 7
        %v258 = vsub.s32 1, %v257
        %v259 = vrot.slane %v246, %v258
        %v260 = vlaneseq
        %v261 = vshrl.u32 %v260, 7
        %v262 = vsub.s32 2, %v261
        %v263 = vrot.slane %v246, %v262
        %v264 = vlaneseq
        %v265 = vshrl.u32 %v264, 7
        %v266 = vsub.s32 3, %v265
        %v267 = vrot.slane %v246, %v266
        %v268 = vlaneseq
        %v269 = vshrl.u32 %v268, 7
        %v270 = vsub.s32 4, %v269
        %v271 = vrot.slane %v246, %v270
        %v272 = vlaneseq
        %v273 = vshrl.u32 %v272, 7
        %v274 = vsub.s32 5, %v273
        %v275 = vrot.slane %v246, %v274
        %v276 = vlaneseq
        %v277 = vshrl.u32 %v276, 7
        %v278 = vsub.s32 6, %v277
        %v279 = vrot.slane %v246, %v278
        %v280 = vlaneseq
        %v281 = vshrl.u32 %v280, 7
        %v282 = vsub.s32 7, %v281
        %v283 = vrot.slane %v246, %v282
        %v284 = vlaneseq
        %v285 = vshrl.u32 %v284, 7
        %v286 = vsub.s32 0, %v285
        %v287 = vrot.slane %v249, %v286
        %v288 = vlaneseq
        %v289 = vshrl.u32 %v288, 7
        %v290 = vsub.s32 1, %v289
        %v291 = vrot.slane %v249, %v290
        %v292 = vlaneseq
        %v293 = vshrl.u32 %v292, 7
        %v294 = vsub.s32 2, %v293
        %v295 = vrot.slane %v249, %v294
        %v296 = vlaneseq
        %v297 = vshrl.u32 %v296, 7
        %v298 = vsub.s32 3, %v297
        %v299 = vrot.slane %v249, %v298
        %v300 = vlaneseq
        %v301 = vshrl.u32 %v300, 7
        %v302 = vsub.s32 4, %v301
        %v303 = vrot.slane %v249, %v302
        %v304 = vlaneseq
        %v305 = vshrl.u32 %v304, 7
        %v306 = vsub.s32 5, %v305
        %v307 = vrot.slane %v249, %v306
        %v308 = vlaneseq
        %v309 = vshrl.u32 %v308, 7
        %v310 = vsub.s32 6, %v309
        %v311 = vrot.slane %v249, %v310
        %v312 = vlaneseq
        %v313 = vshrl.u32 %v312, 7
        %v314 = vsub.s32 7, %v313
        %v315 = vrot.slane %v249, %v314
        %v316 = vcombine.low %v255, %v259
        %v317 = vcombine.low %v263, %v267
        %v318 = vcombine.low %v271, %v275
        %v319 = vcombine.low %v279, %v283
        %v321 = vunpack.c.l.s4 1966171168
        %v322 = vunpack.c.0.s8 %v321
        %v323 = vlaneseq
        %v324 = vshrl.u32 %v323, 7
        %v325 = vsub.s32 %v322, %v324
        %v326 = vrot.slane %v316, %v325
        %v328 = vunpack.c.l.s4 1966171168
        %v329 = vunpack.c.0.s8 %v328
        %v330 = vlaneseq
        %v331 = vshrl.u32 %v330, 7
        %v332 = vsub.s32 %v329, %v331
        %v333 = vrot.slane %v317, %v332
        %v335 = vunpack.c.l.s4 1966171168
        %v336 = vunpack.c.0.s8 %v335
        %v337 = vlaneseq
        %v338 = vshrl.u32 %v337, 7
        %v339 = vsub.s32 %v336, %v338
        %v340 = vrot.slane %v318, %v339
        %v342 = vunpack.c.l.s4 1966171168
        %v343 = vunpack.c.0.s8 %v342
        %v344 = vlaneseq
        %v345 = vshrl.u32 %v344, 7
        %v346 = vsub.s32 %v343, %v345
        %v347 = vrot.slane %v319, %v346
        %v348 = vcombine.low %v326, %v333
        %v349 = vcombine.low %v340, %v347
        %v351 = vunpack.c.l.s4 1966171168
        %v352 = vunpack.c.0.s8 %v351
        %v353 = vlaneseq
        %v354 = vshrl.u32 %v353, 7
        %v355 = vsub.s32 %v352, %v354
        %v356 = vrot.slane %v348, %v355
        %v358 = vunpack.c.l.s4 1966171168
        %v359 = vunpack.c.0.s8 %v358
        %v360 = vlaneseq
        %v361 = vshrl.u32 %v360, 7
        %v362 = vsub.s32 %v359, %v361
        %v363 = vrot.slane %v349, %v362
        %v364 = vcombine.low %v356, %v363
        %v365 = vcombine.low %v287, %v291
        %v366 = vcombine.low %v295, %v299
        %v367 = vcombine.low %v303, %v307
        %v368 = vcombine.low %v311, %v315
        %v370 = vunpack.c.l.s4 1966171168
        %v371 = vunpack.c.0.s8 %v370
        %v372 = vlaneseq
        %v373 = vshrl.u32 %v372, 7
        %v374 = vsub.s32 %v371, %v373
        %v375 = vrot.slane %v365, %v374
        %v377 = vunpack.c.l.s4 1966171168
        %v378 = vunpack.c.0.s8 %v377
        %v379 = vlaneseq
        %v380 = vshrl.u32 %v379, 7
        %v381 = vsub.s32 %v378, %v380
        %v382 = vrot.slane %v366, %v381
        %v384 = vunpack.c.l.s4 1966171168
        %v385 = vunpack.c.0.s8 %v384
        %v386 = vlaneseq
        %v387 = vshrl.u32 %v386, 7
        %v388 = vsub.s32 %v385, %v387
        %v389 = vrot.slane %v367, %v388
        %v391 = vunpack.c.l.s4 1966171168
        %v392 = vunpack.c.0.s8 %v391
        %v393 = vlaneseq
        %v394 = vshrl.u32 %v393, 7
        %v395 = vsub.s32 %v392, %v394
        %v396 = vrot.slane %v368, %v395
        %v397 = vcombine.low %v375, %v382
        %v398 = vcombine.low %v389, %v396
        %v400 = vunpack.c.l.s4 1966171168
        %v401 = vunpack.c.0.s8 %v400
        %v402 = vlaneseq
        %v403 = vshrl.u32 %v402, 7
        %v404 = vsub.s32 %v401, %v403
        %v405 = vrot.slane %v397, %v404
        %v407 = vunpack.c.l.s4 1966171168
        %v408 = vunpack.c.0.s8 %v407
        %v409 = vlaneseq
        %v410 = vshrl.u32 %v409, 7
        %v411 = vsub.s32 %v408, %v410
        %v412 = vrot.slane %v398, %v411
        %v413 = vcombine.low %v405, %v412
        %414 = vset.pattern.permute.xlu0 0
        %415 = vperm.xlu0 %414, %v364
        %v416 = vpop.permute.xlu0 %415
        %417 = vset.pattern.permute.xlu0 0
        %418 = vperm.xlu0 %417, %v413
        %v419 = vpop.permute.xlu0 %418
        %v420 = vlaneseq
        %v421 = vand.u32 %v420, 127
        %v422 = vlaneseq
        %v423 = vshrl.u32 %v422, 7
        %v424 = vsub.s32 %v421, %v423
        %v425 = vrot.slane %v416, %v424
        %v426 = vadd.s32 %v421, 4294967288
        %v427 = vlaneseq
        %v428 = vshrl.u32 %v427, 7
        %v429 = vsub.s32 %v426, %v428
        %v430 = vrot.slane %v419, %v429
        %vm431 = vcmask 130112
        %v432 = vsel %vm431, %v430, %v425
        %v434 = vunpack.c.l.s4 1966171168
        %v435 = vunpack.c.0.s8 %v434
        %v436 = vlaneseq
        %v437 = vshrl.u32 %v436, 7
        %v438 = vsub.s32 %v435, %v437
        %v439 = vrot.slane %v432, %v438
        %v441 = vunpack.c.l.s4 1966171168
        %v442 = vunpack.c.0.s8 %v441
        %v443 = vlaneseq
        %v444 = vshrl.u32 %v443, 7
        %v445 = vsub.s32 %v442, %v444
        %v446 = vrot.slane %v439, %v445
        %v448 = vadd.f32 %v239, %v446
        %vm449 = vcmask 122880
        %450 = vst.msk [vmem:[#allocation2] sm:$0x1] %vm449, %v448
        %v451 = vld [vmem:[#allocation3] sm:$0x1]
        %v452 = vld [vmem:[%s201] sm:$0xff]
        %v453 = vld [vmem:[%s201 + $0x8] sm:$0xff]
        %v454 = vld [vmem:[%s201 + $0x10] sm:$0xff]
        %v455 = vld [vmem:[%s201 + $0x18] sm:$0xff]
        %v456 = vmax.f32 %v452, %v453
        %457 = vmax.xlane.f32.xlu0 %v456
        %v458 = vpop.xlane.xlu0 %457
        %v459 = vmax.f32 %v454, %v455
        %460 = vmax.xlane.f32.xlu0 %v459
        %v461 = vpop.xlane.xlu0 %460
        %v464 = vlaneseq
        %v465 = vshrl.u32 %v464, 7
        %v466 = vsub.s32 0, %v465
        %v467 = vrot.slane %v458, %v466
        %v468 = vlaneseq
        %v469 = vshrl.u32 %v468, 7
        %v470 = vsub.s32 1, %v469
        %v471 = vrot.slane %v458, %v470
        %v472 = vlaneseq
        %v473 = vshrl.u32 %v472, 7
        %v474 = vsub.s32 2, %v473
        %v475 = vrot.slane %v458, %v474
        %v476 = vlaneseq
        %v477 = vshrl.u32 %v476, 7
        %v478 = vsub.s32 3, %v477
        %v479 = vrot.slane %v458, %v478
        %v480 = vlaneseq
        %v481 = vshrl.u32 %v480, 7
        %v482 = vsub.s32 4, %v481
        %v483 = vrot.slane %v458, %v482
        %v484 = vlaneseq
        %v485 = vshrl.u32 %v484, 7
        %v486 = vsub.s32 5, %v485
        %v487 = vrot.slane %v458, %v486
        %v488 = vlaneseq
        %v489 = vshrl.u32 %v488, 7
        %v490 = vsub.s32 6, %v489
        %v491 = vrot.slane %v458, %v490
        %v492 = vlaneseq
        %v493 = vshrl.u32 %v492, 7
        %v494 = vsub.s32 7, %v493
        %v495 = vrot.slane %v458, %v494
        %v496 = vlaneseq
        %v497 = vshrl.u32 %v496, 7
        %v498 = vsub.s32 0, %v497
        %v499 = vrot.slane %v461, %v498
        %v500 = vlaneseq
        %v501 = vshrl.u32 %v500, 7
        %v502 = vsub.s32 1, %v501
        %v503 = vrot.slane %v461, %v502
        %v504 = vlaneseq
        %v505 = vshrl.u32 %v504, 7
        %v506 = vsub.s32 2, %v505
        %v507 = vrot.slane %v461, %v506
        %v508 = vlaneseq
        %v509 = vshrl.u32 %v508, 7
        %v510 = vsub.s32 3, %v509
        %v511 = vrot.slane %v461, %v510
        %v512 = vlaneseq
        %v513 = vshrl.u32 %v512, 7
        %v514 = vsub.s32 4, %v513
        %v515 = vrot.slane %v461, %v514
        %v516 = vlaneseq
        %v517 = vshrl.u32 %v516, 7
        %v518 = vsub.s32 5, %v517
        %v519 = vrot.slane %v461, %v518
        %v520 = vlaneseq
        %v521 = vshrl.u32 %v520, 7
        %v522 = vsub.s32 6, %v521
        %v523 = vrot.slane %v461, %v522
        %v524 = vlaneseq
        %v525 = vshrl.u32 %v524, 7
        %v526 = vsub.s32 7, %v525
        %v527 = vrot.slane %v461, %v526
        %v528 = vcombine.low %v467, %v471
        %v529 = vcombine.low %v475, %v479
        %v530 = vcombine.low %v483, %v487
        %v531 = vcombine.low %v491, %v495
        %v533 = vunpack.c.l.s4 1966171168
        %v534 = vunpack.c.0.s8 %v533
        %v535 = vlaneseq
        %v536 = vshrl.u32 %v535, 7
        %v537 = vsub.s32 %v534, %v536
        %v538 = vrot.slane %v528, %v537
        %v540 = vunpack.c.l.s4 1966171168
        %v541 = vunpack.c.0.s8 %v540
        %v542 = vlaneseq
        %v543 = vshrl.u32 %v542, 7
        %v544 = vsub.s32 %v541, %v543
        %v545 = vrot.slane %v529, %v544
        %v547 = vunpack.c.l.s4 1966171168
        %v548 = vunpack.c.0.s8 %v547
        %v549 = vlaneseq
        %v550 = vshrl.u32 %v549, 7
        %v551 = vsub.s32 %v548, %v550
        %v552 = vrot.slane %v530, %v551
        %v554 = vunpack.c.l.s4 1966171168
        %v555 = vunpack.c.0.s8 %v554
        %v556 = vlaneseq
        %v557 = vshrl.u32 %v556, 7
        %v558 = vsub.s32 %v555, %v557
        %v559 = vrot.slane %v531, %v558
        %v560 = vcombine.low %v538, %v545
        %v561 = vcombine.low %v552, %v559
        %v563 = vunpack.c.l.s4 1966171168
        %v564 = vunpack.c.0.s8 %v563
        %v565 = vlaneseq
        %v566 = vshrl.u32 %v565, 7
        %v567 = vsub.s32 %v564, %v566
        %v568 = vrot.slane %v560, %v567
        %v570 = vunpack.c.l.s4 1966171168
        %v571 = vunpack.c.0.s8 %v570
        %v572 = vlaneseq
        %v573 = vshrl.u32 %v572, 7
        %v574 = vsub.s32 %v571, %v573
        %v575 = vrot.slane %v561, %v574
        %v576 = vcombine.low %v568, %v575
        %v577 = vcombine.low %v499, %v503
        %v578 = vcombine.low %v507, %v511
        %v579 = vcombine.low %v515, %v519
        %v580 = vcombine.low %v523, %v527
        %v582 = vunpack.c.l.s4 1966171168
        %v583 = vunpack.c.0.s8 %v582
        %v584 = vlaneseq
        %v585 = vshrl.u32 %v584, 7
        %v586 = vsub.s32 %v583, %v585
        %v587 = vrot.slane %v577, %v586
        %v589 = vunpack.c.l.s4 1966171168
        %v590 = vunpack.c.0.s8 %v589
        %v591 = vlaneseq
        %v592 = vshrl.u32 %v591, 7
        %v593 = vsub.s32 %v590, %v592
        %v594 = vrot.slane %v578, %v593
        %v596 = vunpack.c.l.s4 1966171168
        %v597 = vunpack.c.0.s8 %v596
        %v598 = vlaneseq
        %v599 = vshrl.u32 %v598, 7
        %v600 = vsub.s32 %v597, %v599
        %v601 = vrot.slane %v579, %v600
        %v603 = vunpack.c.l.s4 1966171168
        %v604 = vunpack.c.0.s8 %v603
        %v605 = vlaneseq
        %v606 = vshrl.u32 %v605, 7
        %v607 = vsub.s32 %v604, %v606
        %v608 = vrot.slane %v580, %v607
        %v609 = vcombine.low %v587, %v594
        %v610 = vcombine.low %v601, %v608
        %v612 = vunpack.c.l.s4 1966171168
        %v613 = vunpack.c.0.s8 %v612
        %v614 = vlaneseq
        %v615 = vshrl.u32 %v614, 7
        %v616 = vsub.s32 %v613, %v615
        %v617 = vrot.slane %v609, %v616
        %v619 = vunpack.c.l.s4 1966171168
        %v620 = vunpack.c.0.s8 %v619
        %v621 = vlaneseq
        %v622 = vshrl.u32 %v621, 7
        %v623 = vsub.s32 %v620, %v622
        %v624 = vrot.slane %v610, %v623
        %v625 = vcombine.low %v617, %v624
        %626 = vset.pattern.permute.xlu0 0
        %627 = vperm.xlu0 %626, %v576
        %v628 = vpop.permute.xlu0 %627
        %629 = vset.pattern.permute.xlu0 0
        %630 = vperm.xlu0 %629, %v625
        %v631 = vpop.permute.xlu0 %630
        %v632 = vlaneseq
        %v633 = vshrl.u32 %v632, 7
        %v634 = vsub.s32 %v421, %v633
        %v635 = vrot.slane %v628, %v634
        %v636 = vlaneseq
        %v637 = vshrl.u32 %v636, 7
        %v638 = vsub.s32 %v426, %v637
        %v639 = vrot.slane %v631, %v638
        %v640 = vsel %vm431, %v639, %v635
        %v642 = vunpack.c.l.s4 1966171168
        %v643 = vunpack.c.0.s8 %v642
        %v644 = vlaneseq
        %v645 = vshrl.u32 %v644, 7
        %v646 = vsub.s32 %v643, %v645
        %v647 = vrot.slane %v640, %v646
        %v649 = vunpack.c.l.s4 1966171168
        %v650 = vunpack.c.0.s8 %v649
        %v651 = vlaneseq
        %v652 = vshrl.u32 %v651, 7
        %v653 = vsub.s32 %v650, %v652
        %v654 = vrot.slane %v647, %v653
        %v656 = vmax.f32 %v451, %v654
        %657 = vst.msk [vmem:[#allocation3] sm:$0x1] %vm449, %v656
        // Predicated region
        $region49: #{tpu_custom_call.1} parent=31 // pred_check
          %p658 = pneg %p232
        $region50: #{tpu_custom_call.1} parent=31 // pred_check_branch
          %660 = sbr.rel (%p658) target = $region52
        $region51: #{tpu_custom_call.1} parent=31 // pred_region
          %v661 = vld [vmem:[#allocation2] sm:$0x1]
          %v662 = vmul.f32 %v661, 0.00390625
          %v663 = vld [vmem:[#allocation3] sm:$0x1]
          %v665 = vlaneseq
          %v666 = vshrl.u32 %v665, 7
          %v667 = vsub.s32 0, %v666
          %v668 = vrot.slane %v663, %v667
          %vm670 = vcmask 1040384
          %v671 = vsel %vm670, %v662, %v668
          %v672 = vld [vmem:[#allocation7] sm:$0xff]
          %v673 = vld [vmem:[#allocation7 + $0x8] sm:$0xff]
          %vm674 = vcmask 130048
          %v676 = vsel %vm674, %v671, 0
          %678 = vmatprep.subr.mxu0 0.0
          %679 = vmatpush1.msra.mxu0 %v672
          %680 = vmatprep.subr.mxu0 0.0
          %681 = vmatpush1.msra.mxu0 %v673
          %682 = vmatprep.subr.mxu0 0.0
          %683 = vmatpush1.msra.mxu0 0.0
          %684 = vmatprep.subr.mxu0 0.0
          %685 = vmatpush1.msra.mxu0 0.0
          %686 = vmatprep.subr.mxu0 0.0
          %687 = vmatpush1.msra.mxu0 0.0
          %688 = vmatprep.subr.mxu0 0.0
          %689 = vmatpush1.msra.mxu0 0.0
          %690 = vmatprep.subr.mxu0 0.0
          %691 = vmatpush1.msra.mxu0 0.0
          %692 = vmatprep.subr.mxu0 0.0
          %693 = vmatpush1.msra.mxu0 0.0
          %694 = vmatprep.subr.mxu0 0.0
          %695 = vmatpush1.msra.mxu0 0.0
          %696 = vmatprep.subr.mxu0 0.0
          %697 = vmatpush1.msra.mxu0 0.0
          %698 = vmatprep.subr.mxu0 0.0
          %699 = vmatpush1.msra.mxu0 0.0
          %700 = vmatprep.subr.mxu0 0.0
          %701 = vmatpush1.msra.mxu0 0.0
          %702 = vmatprep.subr.mxu0 0.0
          %703 = vmatpush1.msra.mxu0 0.0
          %704 = vmatprep.subr.mxu0 0.0
          %705 = vmatpush1.msra.mxu0 0.0
          %706 = vmatprep.subr.mxu0 0.0
          %707 = vmatpush1.msra.mxu0 0.0
          %708 = vmatprep.subr.mxu0 0.0
          %709 = vmatpush1.msra.mxu0 0.0
          %710 = vmatprep.subr.mxu0 0.0
          %711 = vmatpush1.msra.mxu0 0.0
          %712 = vmatprep.subr.mxu0 0.0
          %713 = vmatpush1.msra.mxu0 0.0
          %714 = vmatprep.subr.mxu0 0.0
          %715 = vmatpush1.msra.mxu0 0.0
          %716 = vmatprep.subr.mxu0 0.0
          %717 = vmatpush1.msra.mxu0 0.0
          %718 = vmatprep.subr.mxu0 0.0
          %719 = vmatpush1.msra.mxu0 0.0
          %720 = vmatprep.subr.mxu0 0.0
          %721 = vmatpush1.msra.mxu0 0.0
          %722 = vmatprep.subr.mxu0 0.0
          %723 = vmatpush1.msra.mxu0 0.0
          %724 = vmatprep.subr.mxu0 0.0
          %725 = vmatpush1.msra.mxu0 0.0
          %726 = vmatprep.subr.mxu0 0.0
          %727 = vmatpush1.msra.mxu0 0.0
          %728 = vmatprep.subr.mxu0 0.0
          %729 = vmatpush1.msra.mxu0 0.0
          %730 = vmatprep.subr.mxu0 0.0
          %731 = vmatpush1.msra.mxu0 0.0
          %732 = vmatprep.subr.mxu0 0.0
          %733 = vmatpush1.msra.mxu0 0.0
          %734 = vmatprep.subr.mxu0 0.0
          %735 = vmatpush1.msra.mxu0 0.0
          %736 = vmatprep.subr.mxu0 0.0
          %737 = vmatpush1.msra.mxu0 0.0
          %738 = vmatprep.subr.mxu0 0.0
          %739 = vmatpush1.msra.mxu0 0.0
          %740 = vmatprep.subr.mxu0 0.0
          %741 = vmatpush1.msra.mxu0 0.0
          %742 = vmatprep.mubr.f32.mxu0 0.0
          %743 = vmatmul.mubr.f32.gmra.mrb[0].mxu0 %v676
          %v744 = vpop.f32.mrb[0].mxu0
          %v745 = vadd.f32 0.0, %v744
          %v746 = vpop.f32.mrb[0].mxu0
          %747 = vdwg.mxu0
          %v748 = vmax.f32 %v745, 0.0
          %v749 = vld [vmem:[#allocation9] sm:$0xf]
          %vm750 = vcmask 31744
          %v752 = vsel %vm750, %v748, 0
          %vm754 = vcmask 1043456
          %v756 = vsel %vm754, %v749, 0
          %758 = vmatprep.subr.mxu0 0.0
          %759 = vmatpush1.msra.mxu0 %v756
          %760 = vmatprep.subr.mxu0 0.0
          %761 = vmatpush1.msra.mxu0 0.0
          %762 = vmatprep.subr.mxu0 0.0
          %763 = vmatpush1.msra.mxu0 0.0
          %764 = vmatprep.subr.mxu0 0.0
          %765 = vmatpush1.msra.mxu0 0.0
          %766 = vmatprep.subr.mxu0 0.0
          %767 = vmatpush1.msra.mxu0 0.0
          %768 = vmatprep.subr.mxu0 0.0
          %769 = vmatpush1.msra.mxu0 0.0
          %770 = vmatprep.subr.mxu0 0.0
          %771 = vmatpush1.msra.mxu0 0.0
          %772 = vmatprep.subr.mxu0 0.0
          %773 = vmatpush1.msra.mxu0 0.0
          %774 = vmatprep.subr.mxu0 0.0
          %775 = vmatpush1.msra.mxu0 0.0
          %776 = vmatprep.subr.mxu0 0.0
          %777 = vmatpush1.msra.mxu0 0.0
          %778 = vmatprep.subr.mxu0 0.0
          %779 = vmatpush1.msra.mxu0 0.0
          %780 = vmatprep.subr.mxu0 0.0
          %781 = vmatpush1.msra.mxu0 0.0
          %782 = vmatprep.subr.mxu0 0.0
          %783 = vmatpush1.msra.mxu0 0.0
          %784 = vmatprep.subr.mxu0 0.0
          %785 = vmatpush1.msra.mxu0 0.0
          %786 = vmatprep.subr.mxu0 0.0
          %787 = vmatpush1.msra.mxu0 0.0
          %788 = vmatprep.subr.mxu0 0.0
          %789 = vmatpush1.msra.mxu0 0.0
          %790 = vmatprep.subr.mxu0 0.0
          %791 = vmatpush1.msra.mxu0 0.0
          %792 = vmatprep.subr.mxu0 0.0
          %793 = vmatpush1.msra.mxu0 0.0
          %794 = vmatprep.subr.mxu0 0.0
          %795 = vmatpush1.msra.mxu0 0.0
          %796 = vmatprep.subr.mxu0 0.0
          %797 = vmatpush1.msra.mxu0 0.0
          %798 = vmatprep.subr.mxu0 0.0
          %799 = vmatpush1.msra.mxu0 0.0
          %800 = vmatprep.subr.mxu0 0.0
          %801 = vmatpush1.msra.mxu0 0.0
          %802 = vmatprep.subr.mxu0 0.0
          %803 = vmatpush1.msra.mxu0 0.0
          %804 = vmatprep.subr.mxu0 0.0
          %805 = vmatpush1.msra.mxu0 0.0
          %806 = vmatprep.subr.mxu0 0.0
          %807 = vmatpush1.msra.mxu0 0.0
          %808 = vmatprep.subr.mxu0 0.0
          %809 = vmatpush1.msra.mxu0 0.0
          %810 = vmatprep.subr.mxu0 0.0
          %811 = vmatpush1.msra.mxu0 0.0
          %812 = vmatprep.subr.mxu0 0.0
          %813 = vmatpush1.msra.mxu0 0.0
          %814 = vmatprep.subr.mxu0 0.0
          %815 = vmatpush1.msra.mxu0 0.0
          %816 = vmatprep.subr.mxu0 0.0
          %817 = vmatpush1.msra.mxu0 0.0
          %818 = vmatprep.subr.mxu0 0.0
          %819 = vmatpush1.msra.mxu0 0.0
          %820 = vmatprep.subr.mxu0 0.0
          %821 = vmatpush1.msra.mxu0 0.0
          %822 = vmatprep.mubr.f32.mxu0 0.0
          %823 = vmatmul.mubr.f32.gmra.mrb[0].mxu0 %v752
          %v824 = vpop.f32.mrb[0].mxu0
          %v825 = vadd.f32 0.0, %v824
          %v826 = vpop.f32.mrb[0].mxu0
          %827 = vdwg.mxu0
          %v829 = vrot.slane %v825, 1
          %v831 = vadd.f32 %v825, %v829
          %v832 = vxor.u32 %v831, 2147483648
          %v833 = vmul.f32 %v832, 1.442695
          %v834 = vpow.pop %v833
          %v835 = vadd.f32 %v834, 1.0
          %v836 = vrcp.pop %v835
          %v837 = vmul.f32 1.0, %v836
          %838 = vst.msk [vmem:[%s230] sm:$0x1] %vm449, %v837
        $region52: #{tpu_custom_call.1} parent=31 // pred_fallthru
          _
        %s839 = sand.u32 %s111, 1
        %s840 = scalar_lea.sflag [#allocation6], %s839
        %s841 = sand.u32 %s111, 1
        %s842 = scalar_lea.vmem [#allocation10], %s841
        // Predicated region
        $region53: #{tpu_custom_call.1} parent=31 // pred_check
          %p843 = pneg %p121
        $region54: #{tpu_custom_call.1} parent=31 // pred_check_branch
          %845 = sbr.rel (%p843) target = $region56
        $region55: #{tpu_custom_call.1} parent=31 // pred_region
          %s847 = ssub.s32 16, 16
          %848 = vsyncadd %s840, %s847
          %s849 = smul.addr %s25, 16
          %s850 = scalar_lea.hbm %s3, %s849
          %s852 = sshll.u32 %s842, 4
          %s853 = int_to_ptr.vmem [resolvable:$true] %s852
          %855 = dma.vmem_to_hbm [thread:$0]  %s853, 16, %s850, %s840
        $region56: #{tpu_custom_call.1} parent=31 // pred_fallthru
          _
      $region32: #{tpu_custom_call.1} parent=5 // pred_fallthru
        _
      %p856 = scmp.le.s32.totalorder 2, %s16
      // Predicated region
      $region57: #{tpu_custom_call.1} parent=5 // pred_check
        %p857 = pneg %p856
      $region58: #{tpu_custom_call.1} parent=5 // pred_check_branch
        %859 = sbr.rel (%p857) target = $region60
      $region59: #{tpu_custom_call.1} parent=5 // pred_region
        %s860 = ssub.s32 %s16, 2
        // Predicated region
        $region61: #{tpu_custom_call.1} parent=59 // pred_check
          %p861 = pneg %p127
        $region62: #{tpu_custom_call.1} parent=59 // pred_check_branch
          %863 = sbr.rel (%p861) target = $region64
        $region63: #{tpu_custom_call.1} parent=59 // pred_region
          %s864 = sand.u32 %s112, 1
          %s865 = scalar_lea.sflag [#allocation6], %s864
          %s866 = sand.u32 %s112, 1
          %s867 = scalar_lea.vmem [#allocation10], %s866
          %868 = dma.done %s865, 16
        $region64: #{tpu_custom_call.1} parent=59 // pred_fallthru
          _
      $region60: #{tpu_custom_call.1} parent=5 // pred_fallthru
        _
    $region6: #{tpu_custom_call.1} parent=1 // loop_footer
      %s20 = sadd.s32 1, %s16
    $region7: #{tpu_custom_call.1} parent=1 // loop_footer_branch
      %15 = sbr.rel target = $region3
    $region8: #{tpu_custom_call.1} parent=1 // loop_exit
      _
    %869 = vsyncpa [#allocation5], 1
    %s870 = scalar_lea.sflag [#allocation5], 1
    %871 = vsyncpa %s870, 1
    %872 = vsyncpa [#allocation8], 1
    %873 = vsyncpa [#allocation6], 1
    %s874 = scalar_lea.sflag [#allocation6], 1
    %875 = vsyncpa %s874, 1

</llo_original>
